<compile_context>
chip_gen: v6e
topology: v6e:2x2x1
jax: 0.10.0
libtpu: 0.0.40
codegen_flags: <defaults>
</compile_context>

<pallas_src>
import math

import jax
import jax.numpy as jnp
from jax.experimental import pallas as pl
from jax.experimental.pallas import tpu as pltpu

EPS = 1e-5


# ----------------------------------------------------------------------------
# Kernels
# ----------------------------------------------------------------------------
def _make_fused_kernel(slope: float, cx: int, hw: int):
    """Whole-image kernel: InstanceNorm stats computed in-kernel."""
    inv_hw = 1.0 / float(hw)

    def kernel(x_ref, hm_ref, ws_ref, bs_ref, wgb_ref, bgb_ref, o_ref):
        x = x_ref[...]                                       # (Cx, HW)
        hm = hm_ref[...]                                     # (Cl, HW)

        # InstanceNorm statistics over the lane (HW) axis — single read of x.
        mean = jnp.sum(x, axis=-1, keepdims=True) * inv_hw   # (Cx, 1)
        ex2 = jnp.sum(x * x, axis=-1, keepdims=True) * inv_hw
        var = jnp.maximum(ex2 - mean * mean, 0.0)
        istd = jax.lax.rsqrt(var + EPS)

        # mlp_shared (1x1 conv) + leaky relu (gain folded into wgb).
        h = jnp.dot(ws_ref[...], hm, preferred_element_type=jnp.float32)
        h = h + bs_ref[...]
        h = jnp.where(h >= 0.0, h, h * slope)

        # Fused mlp_gamma|mlp_beta: one (2*Cx, Ch) @ (Ch, HW) matmul.
        gb = jnp.dot(wgb_ref[...], h, preferred_element_type=jnp.float32)
        gb = gb + bgb_ref[...]
        gamma1 = gb[:cx, :]                                  # includes folded "+1"
        beta = gb[cx:, :]

        x_n = (x - mean) * istd
        o_ref[...] = (x_n * gamma1 + beta + 0.1 * x).astype(o_ref.dtype)

    return kernel


def _make_tiled_kernel(slope: float, cx: int):
    """HW-tiled kernel: InstanceNorm stats hoisted, passed as (Cx, 1) refs."""

    def kernel(x_ref, hm_ref, mean_ref, istd_ref,
               ws_ref, bs_ref, wgb_ref, bgb_ref, o_ref):
        x = x_ref[...]                                       # (Cx, T)
        hm = hm_ref[...]                                     # (Cl, T)

        h = jnp.dot(ws_ref[...], hm, preferred_element_type=jnp.float32)
        h = h + bs_ref[...]
        h = jnp.where(h >= 0.0, h, h * slope)

        gb = jnp.dot(wgb_ref[...], h, preferred_element_type=jnp.float32)
        gb = gb + bgb_ref[...]
        gamma1 = gb[:cx, :]                                  # includes folded "+1"
        beta = gb[cx:, :]

        x_n = (x - mean_ref[...]) * istd_ref[...]
        o_ref[...] = (x_n * gamma1 + beta + 0.1 * x).astype(o_ref.dtype)

    return kernel


# ----------------------------------------------------------------------------
# Wrapper
# ----------------------------------------------------------------------------
def _pick_hw_tile(hw: int, max_tile: int) -> int:
    """Largest lane-dense (multiple of 128) divisor of hw <= max_tile."""
    if hw <= max_tile:
        return hw                      # full extent is always legal
    if hw % 128 != 0:
        return hw                      # fall back to full extent (still legal)
    t = (max_tile // 128) * 128
    while t >= 128 and hw % t != 0:
        t -= 128
    return t if t >= 128 else hw


def _fused_vmem_bytes(cx: int, cl: int, ch: int, hw: int) -> int:
    """Rough per-grid-step VMEM upper bound for the fused path."""
    io = 2 * (cx + cl + cx) * hw * 4          # x, hm, out (double-buffered)
    inter = (ch + 2 * cx) * hw * 4            # h and gamma|beta intermediates
    return io + inter


def sel_filt_forward(x_nchw, hm_nchw, packed, *, slope=0.2, max_hw_tile=2048,
                     force_tiled=False, fused_vmem_budget=24 * 1024 * 1024):
    """x_nchw: (N, norm_nc, H, W); hm_nchw: (N, label_nc, H, W).

    `packed` comes from prepare_params(): gain/"+1"-folded, gamma/beta-fused.
    """
    N, Cx, H, W = x_nchw.shape
    _, Cl, Hh, Wh = hm_nchw.shape
    assert (H, W) == (Hh, Wh), "upfirdn2d downsample path not implemented"
    HW = H * W

    # NCHW -> (N, C, HW): channel-major, HW on the lane axis.  Free reshape.
    x = x_nchw.reshape(N, Cx, HW)
    hm = hm_nchw.reshape(N, Cl, HW)

    ws, bs = packed["w_shared"], packed["b_shared"]   # (Ch, Cl), (Ch, 1)
    wgb, bgb = packed["w_gb"], packed["b_gb"]         # (2Cx, Ch), (2Cx, 1)
    Ch = ws.shape[0]

    use_fused = (not force_tiled) and \
        (_fused_vmem_bytes(Cx, Cl, Ch, HW) <= fused_vmem_budget)

    if use_fused:
        # --- single-pass kernel: grid over images, stats computed in-kernel ---
        kernel = _make_fused_kernel(float(slope), Cx, HW)
        const = lambda shape: pl.BlockSpec(shape, lambda n: tuple(0 for _ in shape))
        out = pl.pallas_call(
            kernel,
            out_shape=jax.ShapeDtypeStruct((N, Cx, HW), jnp.float32),
            grid_spec=pltpu.PrefetchScalarGridSpec(
                num_scalar_prefetch=0,
                grid=(N,),
                in_specs=[
                    pl.BlockSpec((None, Cx, HW), lambda n: (n, 0, 0)),   # x
                    pl.BlockSpec((None, Cl, HW), lambda n: (n, 0, 0)),   # hm
                    const((Ch, Cl)), const((Ch, 1)),                     # shared
                    const((2 * Cx, Ch)), const((2 * Cx, 1)),             # gamma|beta
                ],
                out_specs=pl.BlockSpec((None, Cx, HW), lambda n: (n, 0, 0)),
            ),
            compiler_params=pltpu.CompilerParams(
                dimension_semantics=("parallel",),
                vmem_limit_bytes=32 * 1024 * 1024),
        )(x, hm, ws, bs, wgb, bgb)
        return out.reshape(N, Cx, H, W)

    # --- tiled path: hoisted single-pass InstanceNorm stats over full HW ---
    mean = jnp.mean(x, axis=2, keepdims=True)                      # (N,Cx,1)
    ex2 = jnp.mean(x * x, axis=2, keepdims=True)                   # one pass
    var = jnp.maximum(ex2 - mean * mean, 0.0)
    istd = jax.lax.rsqrt(var + EPS)

    T = _pick_hw_tile(HW, max_hw_tile)
    n_t = HW // T

    kernel = _make_tiled_kernel(float(slope), Cx)
    const = lambda shape: pl.BlockSpec(shape, lambda n, t: tuple(0 for _ in shape))

    out = pl.pallas_call(
        kernel,
        out_shape=jax.ShapeDtypeStruct((N, Cx, HW), jnp.float32),
        grid_spec=pltpu.PrefetchScalarGridSpec(
            num_scalar_prefetch=0,
            grid=(N, n_t),
            in_specs=[
                pl.BlockSpec((None, Cx, T), lambda n, t: (n, 0, t)),   # x
                pl.BlockSpec((None, Cl, T), lambda n, t: (n, 0, t)),   # hm
                pl.BlockSpec((None, Cx, 1), lambda n, t: (n, 0, 0)),   # mean
                pl.BlockSpec((None, Cx, 1), lambda n, t: (n, 0, 0)),   # inv std
                const((Ch, Cl)), const((Ch, 1)),                       # shared
                const((2 * Cx, Ch)), const((2 * Cx, 1)),               # gamma|beta
            ],
            out_specs=pl.BlockSpec((None, Cx, T), lambda n, t: (n, 0, t)),
        ),
        compiler_params=pltpu.CompilerParams(
            dimension_semantics=("parallel", "parallel"),
            vmem_limit_bytes=32 * 1024 * 1024),
    )(x, hm, mean, istd, ws, bs, wgb, bgb)

    return out.reshape(N, Cx, H, W)


# ----------------------------------------------------------------------------
# Params
# ----------------------------------------------------------------------------
def init_params(key, norm_nc, label_nc, hidden_nc):
    """Deterministic synthetic init for the three 1x1 convs.  Weights stored as
    (Cout, Cin) and biases as (Cout, 1) so the kernel computes W @ activation
    with HW on the MXU N dimension."""
    ks = jax.random.split(key, 6)

    def conv_init(kw, kb, cin, cout):
        bound = 1.0 / math.sqrt(cin)  # PyTorch-style fan_in bound
        w = jax.random.uniform(kw, (cout, cin), jnp.float32, -bound, bound)
        b = jax.random.uniform(kb, (cout, 1), jnp.float32, -bound, bound)
        return w, b

    w_s, b_s = conv_init(ks[0], ks[1], label_nc, hidden_nc)
    w_g, b_g = conv_init(ks[2], ks[3], hidden_nc, norm_nc)
    w_b, b_b = conv_init(ks[4], ks[5], hidden_nc, norm_nc)
    return {"w_shared": w_s, "b_shared": b_s,
            "w_gamma": w_g, "b_gamma": b_g,
            "w_beta": w_b, "b_beta": b_b}


def prepare_params(params, *, gain=math.sqrt(2.0)):
    """One-time constant folds:
      * fuse gamma/beta convs into a single (2*Cx, Ch) weight,
      * fold the lrelu `gain` into that fused weight (biases add AFTER matmul),
      * fold the "+1" of `x_n * (1 + gamma)` into the gamma bias."""
    w_gb = jnp.concatenate([params["w_gamma"], params["w_beta"]], axis=0) * gain
    b_gb = jnp.concatenate([params["b_gamma"] + 1.0, params["b_beta"]], axis=0)
    return {"w_shared": params["w_shared"], "b_shared": params["b_shared"],
            "w_gb": w_gb, "b_gb": b_gb}


def reference_forward(x, hm, params, *, slope=0.2, gain=math.sqrt(2.0)):
    """Pure-JAX reference (same math, NCHW, unfused params)."""
    def conv1x1(t, w, b):  # t: (N,Cin,H,W), w: (Cout,Cin), b: (Cout,1)
        return jnp.einsum("nchw,dc->ndhw", t, w) + b[:, 0][None, :, None, None]

    mean = jnp.mean(x, axis=(2, 3), keepdims=True)
    var = jnp.mean((x - mean) ** 2, axis=(2, 3), keepdims=True)
    x_n = (x - mean) / jnp.sqrt(var + EPS)

    h = conv1x1(hm, params["w_shared"], params["b_shared"])
    h = jnp.where(h >= 0, h, h * slope) * gain
    gamma = conv1x1(h, params["w_gamma"], params["b_gamma"])
    beta = conv1x1(h, params["w_beta"], params["b_beta"])
    return x_n * (1 + gamma) + beta + 0.1 * x


# ----------------------------------------------------------------------------
# Demo / self-test
# ----------------------------------------------------------------------------
if __name__ == "__main__":
    # SEL_filt(norm_nc=4, label_nc=4, hidden_nc=32), x and hm at 16x16, batch 2
    N, norm_nc, label_nc, hidden_nc, H, W = 2, 4, 4, 32, 16, 16

    key = jax.random.PRNGKey(0)
    kx, khm, kp = jax.random.split(key, 3)
    x = jax.random.normal(kx, (N, norm_nc, H, W), jnp.float32)
    hm = jax.random.normal(khm, (N, label_nc, H, W), jnp.float32)
    params = init_params(kp, norm_nc, label_nc, hidden_nc)
    packed = prepare_params(params, gain=math.sqrt(2.0))

    # Fused path (stats in-kernel, grid over images).
    out_fused = jax.block_until_ready(sel_filt_forward(x, hm, packed, slope=0.2))
    # Tiled path (HW=256 -> 2 lane-dense tiles of 128, hoisted stats).
    out_tiled = jax.block_until_ready(
        sel_filt_forward(x, hm, packed, slope=0.2,
                         force_tiled=True, max_hw_tile=128))

    ref = reference_forward(x, hm, params)
    assert out_fused.shape == (N, norm_nc, H, W)
    assert float(jnp.max(jnp.abs(out_fused - ref))) < 1e-4, "fused path mismatch"
    assert float(jnp.max(jnp.abs(out_tiled - ref))) < 1e-4, "tiled path mismatch"

    print("KERNEL_OK")
</pallas_src>

<mosaic_0001>
module attributes {stable_mosaic.version = 11 : i64} {
  func.func @kernel(%arg0: i32, %arg1: memref<1x4x256xf32, #tpu.memory_space<vmem>>, %arg2: memref<1x4x256xf32, #tpu.memory_space<vmem>>, %arg3: memref<32x4xf32, #tpu.memory_space<vmem>>, %arg4: memref<32x1xf32, #tpu.memory_space<vmem>>, %arg5: memref<8x32xf32, #tpu.memory_space<vmem>>, %arg6: memref<8x1xf32, #tpu.memory_space<vmem>>, %arg7: memref<1x4x256xf32, #tpu.memory_space<vmem>>) attributes {dimension_semantics = [#tpu.dimension_semantics<parallel>], iteration_bounds = array<i64: 2>, scalar_prefetch = 0 : i64, scratch_operands = 0 : i64, tpu.core_type = #tpu.core_type<tc>, window_params = [{transform_indices = @transform_0, window_bounds = array<i64: 1, 4, 256>}, {transform_indices = @transform_1, window_bounds = array<i64: 1, 4, 256>}, {pipeline_mode = #tpu.pipeline_mode<synchronous>, transform_indices = @transform_2, window_bounds = array<i64: 32, 4>}, {pipeline_mode = #tpu.pipeline_mode<synchronous>, transform_indices = @transform_3, window_bounds = array<i64: 32, 1>}, {pipeline_mode = #tpu.pipeline_mode<synchronous>, transform_indices = @transform_4, window_bounds = array<i64: 8, 32>}, {pipeline_mode = #tpu.pipeline_mode<synchronous>, transform_indices = @transform_5, window_bounds = array<i64: 8, 1>}, {transform_indices = @transform_6, window_bounds = array<i64: 1, 4, 256>}]} {
    %c0 = arith.constant 0 : index
    %c0_0 = arith.constant 0 : index
    %c0_1 = arith.constant 0 : index
    %0 = vector.load %arg1[%c0, %c0_0, %c0_1] : memref<1x4x256xf32, #tpu.memory_space<vmem>>, vector<1x4x256xf32>
    %1 = vector.shape_cast %0 : vector<1x4x256xf32> to vector<4x256xf32>
    %c0_2 = arith.constant 0 : index
    %c0_3 = arith.constant 0 : index
    %c0_4 = arith.constant 0 : index
    %2 = vector.load %arg2[%c0_2, %c0_3, %c0_4] : memref<1x4x256xf32, #tpu.memory_space<vmem>>, vector<1x4x256xf32>
    %3 = vector.shape_cast %2 : vector<1x4x256xf32> to vector<4x256xf32>
    %cst = arith.constant dense<0.000000e+00> : vector<4xf32>
    %4 = vector.multi_reduction <add>, %1, %cst [1] : vector<4x256xf32> to vector<4xf32>
    %5 = vector.shape_cast %4 : vector<4xf32> to vector<4x1xf32>
    %cst_5 = arith.constant 3.906250e-03 : f32
    %6 = vector.broadcast %cst_5 : f32 to vector<4x1xf32>
    %7 = arith.mulf %5, %6 : vector<4x1xf32>
    %8 = arith.mulf %1, %1 : vector<4x256xf32>
    %cst_6 = arith.constant dense<0.000000e+00> : vector<4xf32>
    %9 = vector.multi_reduction <add>, %8, %cst_6 [1] : vector<4x256xf32> to vector<4xf32>
    %10 = vector.shape_cast %9 : vector<4xf32> to vector<4x1xf32>
    %cst_7 = arith.constant 3.906250e-03 : f32
    %11 = vector.broadcast %cst_7 : f32 to vector<4x1xf32>
    %12 = arith.mulf %10, %11 : vector<4x1xf32>
    %13 = arith.mulf %7, %7 : vector<4x1xf32>
    %14 = arith.subf %12, %13 : vector<4x1xf32>
    %cst_8 = arith.constant 0.000000e+00 : f32
    %15 = vector.broadcast %cst_8 : f32 to vector<4x1xf32>
    %16 = arith.maximumf %14, %15 : vector<4x1xf32>
    %cst_9 = arith.constant 9.99999974E-6 : f32
    %17 = vector.broadcast %cst_9 : f32 to vector<4x1xf32>
    %18 = arith.addf %16, %17 : vector<4x1xf32>
    %19 = math.rsqrt %18 : vector<4x1xf32>
    %c0_10 = arith.constant 0 : index
    %c0_11 = arith.constant 0 : index
    %20 = vector.load %arg3[%c0_10, %c0_11] : memref<32x4xf32, #tpu.memory_space<vmem>>, vector<32x4xf32>
    %cst_12 = arith.constant dense<0.000000e+00> : vector<32x256xf32>
    %21 = tpu.matmul %20, %3, %cst_12 {dimension_numbers = #tpu.dot_dimension_numbers<[1], [0], [0], [1], [0, 0, 1, 1], [], []>} : vector<32x4xf32>, vector<4x256xf32>, vector<32x256xf32> -> vector<32x256xf32>
    %c0_13 = arith.constant 0 : index
    %c0_14 = arith.constant 0 : index
    %22 = vector.load %arg4[%c0_13, %c0_14] : memref<32x1xf32, #tpu.memory_space<vmem>>, vector<32x1xf32>
    %23 = vector.broadcast %22 : vector<32x1xf32> to vector<32x256xf32>
    %24 = arith.addf %21, %23 : vector<32x256xf32>
    %cst_15 = arith.constant 0.000000e+00 : f32
    %25 = vector.broadcast %cst_15 : f32 to vector<32x256xf32>
    %26 = arith.cmpf oge, %24, %25 : vector<32x256xf32>
    %cst_16 = arith.constant 2.000000e-01 : f32
    %27 = vector.broadcast %cst_16 : f32 to vector<32x256xf32>
    %28 = arith.mulf %24, %27 : vector<32x256xf32>
    %29 = arith.select %26, %24, %28 : vector<32x256xi1>, vector<32x256xf32>
    %c0_17 = arith.constant 0 : index
    %c0_18 = arith.constant 0 : index
    %30 = vector.load %arg5[%c0_17, %c0_18] : memref<8x32xf32, #tpu.memory_space<vmem>>, vector<8x32xf32>
    %cst_19 = arith.constant dense<0.000000e+00> : vector<8x256xf32>
    %31 = tpu.matmul %30, %29, %cst_19 {dimension_numbers = #tpu.dot_dimension_numbers<[1], [0], [0], [1], [0, 0, 1, 1], [], []>} : vector<8x32xf32>, vector<32x256xf32>, vector<8x256xf32> -> vector<8x256xf32>
    %c0_20 = arith.constant 0 : index
    %c0_21 = arith.constant 0 : index
    %32 = vector.load %arg6[%c0_20, %c0_21] : memref<8x1xf32, #tpu.memory_space<vmem>>, vector<8x1xf32>
    %33 = vector.broadcast %32 : vector<8x1xf32> to vector<8x256xf32>
    %34 = arith.addf %31, %33 : vector<8x256xf32>
    %35 = vector.extract_strided_slice %34 {offsets = [0, 0], sizes = [4, 256], strides = [1, 1]} : vector<8x256xf32> to vector<4x256xf32>
    %36 = vector.extract_strided_slice %34 {offsets = [4, 0], sizes = [4, 256], strides = [1, 1]} : vector<8x256xf32> to vector<4x256xf32>
    %37 = vector.broadcast %7 : vector<4x1xf32> to vector<4x256xf32>
    %38 = arith.subf %1, %37 : vector<4x256xf32>
    %39 = vector.broadcast %19 : vector<4x1xf32> to vector<4x256xf32>
    %40 = arith.mulf %38, %39 : vector<4x256xf32>
    %41 = arith.mulf %40, %35 : vector<4x256xf32>
    %42 = arith.addf %41, %36 : vector<4x256xf32>
    %cst_22 = arith.constant 1.000000e-01 : f32
    %43 = vector.broadcast %cst_22 : f32 to vector<4x256xf32>
    %44 = arith.mulf %43, %1 : vector<4x256xf32>
    %45 = arith.addf %42, %44 : vector<4x256xf32>
    %c0_23 = arith.constant 0 : index
    %c0_24 = arith.constant 0 : index
    %c0_25 = arith.constant 0 : index
    %46 = vector.load %arg7[%c0_23, %c0_24, %c0_25] : memref<1x4x256xf32, #tpu.memory_space<vmem>>, vector<1x4x256xf32>
    %47 = vector.shape_cast %46 : vector<1x4x256xf32> to vector<4x256xf32>
    %48 = vector.shape_cast %45 : vector<4x256xf32> to vector<1x4x256xf32>
    tpu.vector_store %arg7[%c0_23, %c0_24, %c0_25], %48 {strides = array<i32>} : memref<1x4x256xf32, #tpu.memory_space<vmem>>, vector<1x4x256xf32>,
    return
  }
  func.func @transform_0(%arg0: i32) -> (i32, i32, i32) {
    %c0_i32 = arith.constant 0 : i32
    %c0_i32_0 = arith.constant 0 : i32
    %c0_i32_1 = arith.constant 0 : i32
    return %arg0, %c0_i32, %c0_i32_0 : i32, i32, i32
  }
  func.func @transform_1(%arg0: i32) -> (i32, i32, i32) {
    %c0_i32 = arith.constant 0 : i32
    %c0_i32_0 = arith.constant 0 : i32
    %c0_i32_1 = arith.constant 0 : i32
    return %arg0, %c0_i32, %c0_i32_0 : i32, i32, i32
  }
  func.func @transform_2(%arg0: i32) -> (i32, i32) {
    %c0_i32 = arith.constant 0 : i32
    %c0_i32_0 = arith.constant 0 : i32
    %c0_i32_1 = arith.constant 0 : i32
    return %c0_i32, %c0_i32_0 : i32, i32
  }
  func.func @transform_3(%arg0: i32) -> (i32, i32) {
    %c0_i32 = arith.constant 0 : i32
    %c0_i32_0 = arith.constant 0 : i32
    %c0_i32_1 = arith.constant 0 : i32
    return %c0_i32, %c0_i32_0 : i32, i32
  }
  func.func @transform_4(%arg0: i32) -> (i32, i32) {
    %c0_i32 = arith.constant 0 : i32
    %c0_i32_0 = arith.constant 0 : i32
    %c0_i32_1 = arith.constant 0 : i32
    return %c0_i32, %c0_i32_0 : i32, i32
  }
  func.func @transform_5(%arg0: i32) -> (i32, i32) {
    %c0_i32 = arith.constant 0 : i32
    %c0_i32_0 = arith.constant 0 : i32
    %c0_i32_1 = arith.constant 0 : i32
    return %c0_i32, %c0_i32_0 : i32, i32
  }
  func.func @transform_6(%arg0: i32) -> (i32, i32, i32) {
    %c0_i32 = arith.constant 0 : i32
    %c0_i32_0 = arith.constant 0 : i32
    %c0_i32_1 = arith.constant 0 : i32
    return %arg0, %c0_i32, %c0_i32_0 : i32, i32, i32
  }
}

</mosaic_0001>

<llo_original>
// kernel: tpu_custom_call.1
$region0: #{tpu_custom_call.1}
  #allocation0 [shape = 'u32[]', space=smem, size = 0x4, offset = 0x4, fixed_abs, tag = 'smem constant byte address 0x4 - core index']
  #allocation1 [shape = 'u32[144,128]{1,0:T(1,128)}', space=vmem, size = 0x12000, scoped, tag = 'internal scratch']
  %s0 = inlined_call_operand.vmem [shape: f32[2,4,256], index: 0, kind: input, shape index: {}]
  %s1 = inlined_call_operand.vmem [shape: f32[2,4,256], index: 1, kind: input, shape index: {}]
  %s2 = inlined_call_operand.vmem [shape: f32[32,4], index: 2, kind: input, shape index: {}]
  %s3 = inlined_call_operand.vmem [shape: f32[32,1], index: 3, kind: input, shape index: {}]
  %s4 = inlined_call_operand.vmem [shape: f32[8,32], index: 4, kind: input, shape index: {}]
  %s5 = inlined_call_operand.vmem [shape: f32[8,1], index: 5, kind: input, shape index: {}]
  %s6 = inlined_call_operand.hbm [shape: f32[2,4,256], index: 6, kind: output, shape index: {}]
  %s7 = sld [smem:[#allocation0]]
  $region57: #{tpu_custom_call.1} parent=0
    _
  %s9 = ssub.s32 1, %s7
  %s10 = scalar_select 0, %s9, %s7
  $region1: #{tpu_custom_call.1} parent=0
    #allocation2 [shape = 'u8[8192]{0}', space=vmem, size = 0x2000, scoped, tag = 'output window, operand 0']
    #allocation3 [shape = 's32[2]{0}', space=sflag, size = 0x8, scoped, tag = 'scoped memory for tpu_custom_call.1']
    %11 = vsyncpa [#allocation3], 0
    %s12 = scalar_lea.sflag [#allocation3], 1
    %13 = vsyncpa %s12, 0
    loop: start=0, step=1, limit=4
    $region2: #{tpu_custom_call.1} parent=1 // loop_pre_header
      _
    $region3: #{tpu_custom_call.1} parent=1 // loop_header
      %s15 = sphi 0, %s19
      %p16 = scmp.ge.s32.totalorder %s15, 4
      %s25 = sphi 0, %s27
      %s28 = sphi 0, %s25
      %s29 = sphi 0, %s28
      %s45 = sphi 0, %s29
      %s51 = sphi 0, %s53
      %s54 = sphi 0, %s51
      %s55 = sphi 0, %s54
      %s71 = sphi 0, %s55
      %s75 = sphi 0, %s75
      %s77 = sphi 0, %s75
      %s78 = sphi 0, %s77
      %s92 = sphi 0, %s78
      %s96 = sphi 0, %s96
      %s98 = sphi 0, %s96
      %s99 = sphi 0, %s98
      %s113 = sphi 0, %s99
      %s117 = sphi 0, %s117
      %s119 = sphi 0, %s117
      %s120 = sphi 0, %s119
      %s134 = sphi 0, %s120
      %s138 = sphi 0, %s138
      %s140 = sphi 0, %s138
      %s141 = sphi 0, %s140
      %s155 = sphi 0, %s141
      %s161 = sphi 0, %s163
      %s164 = sphi 0, %s161
      %s165 = sphi 0, %s164
      %s181 = sphi 0, %s165
    $region4: #{tpu_custom_call.1} parent=1 // loop_header_branch
      %18 = sbr.rel (%p16) target = $region8
    $region5: #{tpu_custom_call.1} parent=1 // loop_body
      %s20 = ssub.s32 %s15, 1
      %s21 = ssub.s32 %s15, 2
      %s22 = sadd.s32 %s15, 1
      %s23 = ssub.s32 %s15, %s22
      %p24 = scmp.eq.s32.totalorder %s23, 0
      %s26 = sadd.s32 %s25, 1
      %s27 = scalar_select %p24, %s25, %s26
      %p30 = pneg %p24
      %p31 = scmp.eq.s32.totalorder %s15, 1
      %p32 = por %p30, %p31
      %p33 = scmp.ne.s32.totalorder %s25, %s28
      %p34 = scmp.eq.s32.totalorder %s15, 0
      %p35 = por %p33, %p34
      %p36 = scmp.ne.s32.totalorder %s25, %s28
      %p37 = scmp.eq.s32.totalorder %s20, 1
      %p38 = por %p36, %p37
      %p39 = scmp.ne.s32.totalorder %s28, %s29
      %p40 = scmp.eq.s32.totalorder %s20, 0
      %p41 = por %p39, %p40
      %p42 = scmp.ne.s32.totalorder %s28, %s29
      %p43 = scmp.eq.s32.totalorder %s21, 1
      %p44 = por %p42, %p43
      %p46 = scmp.ne.s32.totalorder %s29, %s45
      %p47 = scmp.eq.s32.totalorder %s21, 0
      %p48 = por %p46, %p47
      %s49 = ssub.s32 %s15, %s22
      %p50 = scmp.eq.s32.totalorder %s49, 0
      %s52 = sadd.s32 %s51, 1
      %s53 = scalar_select %p50, %s51, %s52
      %p56 = pneg %p50
      %p57 = scmp.eq.s32.totalorder %s15, 1
      %p58 = por %p56, %p57
      %p59 = scmp.ne.s32.totalorder %s51, %s54
      %p60 = scmp.eq.s32.totalorder %s15, 0
      %p61 = por %p59, %p60
      %p62 = scmp.ne.s32.totalorder %s51, %s54
      %p63 = scmp.eq.s32.totalorder %s20, 1
      %p64 = por %p62, %p63
      %p65 = scmp.ne.s32.totalorder %s54, %s55
      %p66 = scmp.eq.s32.totalorder %s20, 0
      %p67 = por %p65, %p66
      %p68 = scmp.ne.s32.totalorder %s54, %s55
      %p69 = scmp.eq.s32.totalorder %s21, 1
      %p70 = por %p68, %p69
      %p72 = scmp.ne.s32.totalorder %s55, %s71
      %p73 = scmp.eq.s32.totalorder %s21, 0
      %p74 = por %p72, %p73
      %s76 = sadd.s32 %s75, 1
      %p79 = scmp.eq.s32.totalorder %s15, 1
      %p80 = scmp.ne.s32.totalorder %s75, %s77
      %p81 = scmp.eq.s32.totalorder %s15, 0
      %p82 = por %p80, %p81
      %p83 = scmp.ne.s32.totalorder %s75, %s77
      %p84 = scmp.eq.s32.totalorder %s20, 1
      %p85 = por %p83, %p84
      %p86 = scmp.ne.s32.totalorder %s77, %s78
      %p87 = scmp.eq.s32.totalorder %s20, 0
      %p88 = por %p86, %p87
      %p89 = scmp.ne.s32.totalorder %s77, %s78
      %p90 = scmp.eq.s32.totalorder %s21, 1
      %p91 = por %p89, %p90
      %p93 = scmp.ne.s32.totalorder %s78, %s92
      %p94 = scmp.eq.s32.totalorder %s21, 0
      %p95 = por %p93, %p94
      %s97 = sadd.s32 %s96, 1
      %p100 = scmp.eq.s32.totalorder %s15, 1
      %p101 = scmp.ne.s32.totalorder %s96, %s98
      %p102 = scmp.eq.s32.totalorder %s15, 0
      %p103 = por %p101, %p102
      %p104 = scmp.ne.s32.totalorder %s96, %s98
      %p105 = scmp.eq.s32.totalorder %s20, 1
      %p106 = por %p104, %p105
      %p107 = scmp.ne.s32.totalorder %s98, %s99
      %p108 = scmp.eq.s32.totalorder %s20, 0
      %p109 = por %p107, %p108
      %p110 = scmp.ne.s32.totalorder %s98, %s99
      %p111 = scmp.eq.s32.totalorder %s21, 1
      %p112 = por %p110, %p111
      %p114 = scmp.ne.s32.totalorder %s99, %s113
      %p115 = scmp.eq.s32.totalorder %s21, 0
      %p116 = por %p114, %p115
      %s118 = sadd.s32 %s117, 1
      %p121 = scmp.eq.s32.totalorder %s15, 1
      %p122 = scmp.ne.s32.totalorder %s117, %s119
      %p123 = scmp.eq.s32.totalorder %s15, 0
      %p124 = por %p122, %p123
      %p125 = scmp.ne.s32.totalorder %s117, %s119
      %p126 = scmp.eq.s32.totalorder %s20, 1
      %p127 = por %p125, %p126
      %p128 = scmp.ne.s32.totalorder %s119, %s120
      %p129 = scmp.eq.s32.totalorder %s20, 0
      %p130 = por %p128, %p129
      %p131 = scmp.ne.s32.totalorder %s119, %s120
      %p132 = scmp.eq.s32.totalorder %s21, 1
      %p133 = por %p131, %p132
      %p135 = scmp.ne.s32.totalorder %s120, %s134
      %p136 = scmp.eq.s32.totalorder %s21, 0
      %p137 = por %p135, %p136
      %s139 = sadd.s32 %s138, 1
      %p142 = scmp.eq.s32.totalorder %s15, 1
      %p143 = scmp.ne.s32.totalorder %s138, %s140
      %p144 = scmp.eq.s32.totalorder %s15, 0
      %p145 = por %p143, %p144
      %p146 = scmp.ne.s32.totalorder %s138, %s140
      %p147 = scmp.eq.s32.totalorder %s20, 1
      %p148 = por %p146, %p147
      %p149 = scmp.ne.s32.totalorder %s140, %s141
      %p150 = scmp.eq.s32.totalorder %s20, 0
      %p151 = por %p149, %p150
      %p152 = scmp.ne.s32.totalorder %s140, %s141
      %p153 = scmp.eq.s32.totalorder %s21, 1
      %p154 = por %p152, %p153
      %p156 = scmp.ne.s32.totalorder %s141, %s155
      %p157 = scmp.eq.s32.totalorder %s21, 0
      %p158 = por %p156, %p157
      %s159 = ssub.s32 %s15, %s22
      %p160 = scmp.eq.s32.totalorder %s159, 0
      %s162 = sadd.s32 %s161, 1
      %s163 = scalar_select %p160, %s161, %s162
      %p166 = pneg %p160
      %p167 = scmp.eq.s32.totalorder %s15, 1
      %p168 = por %p166, %p167
      %p169 = scmp.ne.s32.totalorder %s161, %s164
      %p170 = scmp.eq.s32.totalorder %s15, 0
      %p171 = por %p169, %p170
      %p172 = scmp.ne.s32.totalorder %s161, %s164
      %p173 = scmp.eq.s32.totalorder %s20, 1
      %p174 = por %p172, %p173
      %p175 = scmp.ne.s32.totalorder %s164, %s165
      %p176 = scmp.eq.s32.totalorder %s20, 0
      %p177 = por %p175, %p176
      %p178 = scmp.ne.s32.totalorder %s164, %s165
      %p179 = scmp.eq.s32.totalorder %s21, 1
      %p180 = por %p178, %p179
      %p182 = scmp.ne.s32.totalorder %s165, %s181
      %p183 = scmp.eq.s32.totalorder %s21, 0
      %p184 = por %p182, %p183
      %p185 = scmp.le.s32.totalorder 1, %s15
      %p186 = scmp.lt.s32.totalorder %s15, 3
      %p187 = pnand %p185, %p186
      %p188 = pneg %p187
      // Predicated region
      $region9: #{tpu_custom_call.1} parent=5 // pred_check
        _
      $region10: #{tpu_custom_call.1} parent=5 // pred_check_branch
        %190 = sbr.rel (%p187) target = $region12
      $region11: #{tpu_custom_call.1} parent=5 // pred_region
        %s191 = ssub.s32 %s15, 1
        // Predicated region
        $region13: #{tpu_custom_call.1} parent=11 // pred_check
          %p192 = pneg %p88
        $region14: #{tpu_custom_call.1} parent=11 // pred_check_branch
          %194 = sbr.rel (%p192) target = $region16
        $region15: #{tpu_custom_call.1} parent=11 // pred_region
          _
        $region16: #{tpu_custom_call.1} parent=11 // pred_fallthru
          _
        // Predicated region
        $region17: #{tpu_custom_call.1} parent=11 // pred_check
          %p195 = pneg %p109
        $region18: #{tpu_custom_call.1} parent=11 // pred_check_branch
          %197 = sbr.rel (%p195) target = $region20
        $region19: #{tpu_custom_call.1} parent=11 // pred_region
          _
        $region20: #{tpu_custom_call.1} parent=11 // pred_fallthru
          _
        // Predicated region
        $region21: #{tpu_custom_call.1} parent=11 // pred_check
          %p198 = pneg %p130
        $region22: #{tpu_custom_call.1} parent=11 // pred_check_branch
          %200 = sbr.rel (%p198) target = $region24
        $region23: #{tpu_custom_call.1} parent=11 // pred_region
          _
        $region24: #{tpu_custom_call.1} parent=11 // pred_fallthru
          _
        // Predicated region
        $region25: #{tpu_custom_call.1} parent=11 // pred_check
          %p201 = pneg %p151
        $region26: #{tpu_custom_call.1} parent=11 // pred_check_branch
          %203 = sbr.rel (%p201) target = $region28
        $region27: #{tpu_custom_call.1} parent=11 // pred_region
          _
        $region28: #{tpu_custom_call.1} parent=11 // pred_fallthru
          _
      $region12: #{tpu_custom_call.1} parent=5 // pred_fallthru
        _
      %p204 = scmp.lt.s32.totalorder %s15, 2
      // Predicated region
      $region29: #{tpu_custom_call.1} parent=5 // pred_check
        %p205 = pneg %p204
      $region30: #{tpu_custom_call.1} parent=5 // pred_check_branch
        %207 = sbr.rel (%p205) target = $region32
      $region31: #{tpu_custom_call.1} parent=5 // pred_region
        // Predicated region
        $region33: #{tpu_custom_call.1} parent=31 // pred_check
          %p208 = pneg %p35
        $region34: #{tpu_custom_call.1} parent=31 // pred_check_branch
          %210 = sbr.rel (%p208) target = $region36
        $region35: #{tpu_custom_call.1} parent=31 // pred_region
          %p211 = scmp.lt.s32.totalorder %s15, 1
          %s212 = scalar_select %p211, %s15, 1
          %s213 = smul.addr %s212, 2
          %s214 = smul.addr %s213, 4
          %s215 = scalar_lea.vmem %s0, %s214
        $region36: #{tpu_custom_call.1} parent=31 // pred_fallthru
          _
        // Predicated region
        $region37: #{tpu_custom_call.1} parent=31 // pred_check
          %p216 = pneg %p61
        $region38: #{tpu_custom_call.1} parent=31 // pred_check_branch
          %218 = sbr.rel (%p216) target = $region40
        $region39: #{tpu_custom_call.1} parent=31 // pred_region
          %p219 = scmp.lt.s32.totalorder %s15, 1
          %s220 = scalar_select %p219, %s15, 1
          %s221 = smul.addr %s220, 2
          %s222 = smul.addr %s221, 4
          %s223 = scalar_lea.vmem %s1, %s222
        $region40: #{tpu_custom_call.1} parent=31 // pred_fallthru
          _
      $region32: #{tpu_custom_call.1} parent=5 // pred_fallthru
        _
      %p224 = scmp.le.s32.totalorder 1, %s15
      %p225 = scmp.lt.s32.totalorder %s15, 3
      %p226 = pnand %p224, %p225
      %p227 = pneg %p226
      // Predicated region
      $region41: #{tpu_custom_call.1} parent=5 // pred_check
        _
      $region42: #{tpu_custom_call.1} parent=5 // pred_check_branch
        %229 = sbr.rel (%p226) target = $region44
      $region43: #{tpu_custom_call.1} parent=5 // pred_region
        %s230 = ssub.s32 %s15, 1
        %p231 = scmp.lt.s32.totalorder %s20, 1
        %s232 = scalar_select %p231, %s20, 1
        %s233 = smul.addr %s232, 2
        %s234 = smul.addr %s233, 4
        %s235 = scalar_lea.vmem %s0, %s234
        %p236 = pneg %p41
        %p237 = pneg %p38
        %p238 = scmp.lt.s32.totalorder %s20, 1
        %s239 = scalar_select %p238, %s20, 1
        %s240 = smul.addr %s239, 2
        %s241 = smul.addr %s240, 4
        %s242 = scalar_lea.vmem %s1, %s241
        %p243 = pneg %p67
        %p244 = pneg %p64
        %p245 = pneg %p88
        %p246 = pneg %p85
        %p247 = pneg %p109
        %p248 = pneg %p106
        %p249 = pneg %p130
        %p250 = pneg %p127
        %p251 = pneg %p151
        %p252 = pneg %p148
        %p253 = pneg %p177
        %p254 = pneg %p174
        %s255 = sand.u32 %s164, 1
        %s256 = scalar_lea.sflag [#allocation3], %s255
        %s257 = sand.u32 %s164, 1
        %s258 = smul.addr %s257, 8
        %s259 = scalar_lea.vmem [#allocation2], %s258
        %p260 = scmp.lt.s32.totalorder %s20, 1
        %s261 = scalar_select %p260, %s20, 1
        %s262 = smul.addr %s261, 2
        %s263 = smul.addr %s262, 4
        %s264 = scalar_lea.vmem %s0, %s263
        %p265 = scmp.lt.s32.totalorder %s20, 1
        %s266 = scalar_select %p265, %s20, 1
        %s267 = smul.addr %s266, 2
        %s268 = smul.addr %s267, 4
        %s269 = scalar_lea.vmem %s1, %s268
        %v270 = vld [vmem:[%s264] sm:$0xff]
        %v271 = vld [vmem:[%s269] sm:$0xff]
        %v273 = vcombine.high %v270, %v270
        %vm275 = vcmask 1043456
        %v276 = vsel %vm275, %v270, 0.0
        %v277 = vsel %vm275, %v273, 0.0
        %v278 = vadd.f32 %v276, %v277
        %279 = vadd.xlane.f32.xlu0 %v278
        %v280 = vpop.xlane.xlu0 %279
        %v281 = vmul.f32 %v280, 0.00390625
        %v282 = vmul.f32 %v270, %v270
        %v284 = vcombine.high %v282, %v282
        %v286 = vsel %vm275, %v282, 0.0
        %v287 = vsel %vm275, %v284, 0.0
        %v288 = vadd.f32 %v286, %v287
        %289 = vadd.xlane.f32.xlu0 %v288
        %v290 = vpop.xlane.xlu0 %289
        %v291 = vmul.f32 %v290, 0.00390625
        %v292 = vmul.f32 %v281, %v281
        %v293 = vsub.f32 %v291, %v292
        %v294 = vmax.f32 %v293, 0.0
        %v295 = vadd.f32 %v294, 1e-05
        %v296 = vrsqrt.pop %v295
        %v297 = vld [vmem:[%s2] sm:$0xff]
        %v298 = vld [vmem:[%s2 + $0x8] sm:$0xff]
        %v299 = vld [vmem:[%s2 + $0x10] sm:$0xff]
        %v300 = vld [vmem:[%s2 + $0x18] sm:$0xff]
        %v301 = vld [vmem:[%s3] sm:$0xff]
        %v302 = vld [vmem:[%s3 + $0x8] sm:$0xff]
        %v303 = vld [vmem:[%s3 + $0x10] sm:$0xff]
        %v304 = vld [vmem:[%s3 + $0x18] sm:$0xff]
        %306 = vset.pattern.permute.xlu0 0
        %307 = vperm.xlu0 %306, %v301
        %v308 = vpop.permute.xlu0 %307
        %311 = vset.pattern.permute.xlu0 0
        %312 = vperm.xlu0 %311, %v302
        %v313 = vpop.permute.xlu0 %312
        %316 = vset.pattern.permute.xlu0 0
        %317 = vperm.xlu0 %316, %v303
        %v318 = vpop.permute.xlu0 %317
        %321 = vset.pattern.permute.xlu0 0
        %322 = vperm.xlu0 %321, %v304
        %v323 = vpop.permute.xlu0 %322
        %v326 = vcombine.high %v271, %v271
        %vm327 = vcmask 31744
        %v329 = vsel %vm327, %v297, 0
        %v332 = vsel %vm327, %v298, 0
        %v335 = vsel %vm327, %v299, 0
        %v338 = vsel %vm327, %v300, 0
        %v340 = vsel %vm275, %v271, 0
        %v342 = vsel %vm275, %v326, 0
        %344 = vmatprep.subr.mxu0 0.0
        %345 = vmatpush1.msra.mxu0 0.0
        %346 = vmatprep.subr.mxu0 0.0
        %347 = vmatpush1.msra.mxu0 0.0
        %348 = vmatprep.subr.mxu0 0.0
        %349 = vmatpush1.msra.mxu0 0.0
        %350 = vmatprep.subr.mxu0 0.0
        %351 = vmatpush1.msra.mxu0 0.0
        %352 = vmatprep.subr.mxu0 0.0
        %353 = vmatpush1.msra.mxu0 0.0
        %354 = vmatprep.subr.mxu0 0.0
        %355 = vmatpush1.msra.mxu0 0.0
        %356 = vmatprep.subr.mxu0 0.0
        %357 = vmatpush1.msra.mxu0 0.0
        %358 = vmatprep.subr.mxu0 0.0
        %359 = vmatpush1.msra.mxu0 0.0
        %360 = vmatprep.subr.mxu0 0.0
        %361 = vmatpush1.msra.mxu0 0.0
        %362 = vmatprep.subr.mxu0 0.0
        %363 = vmatpush1.msra.mxu0 0.0
        %364 = vmatprep.subr.mxu0 0.0
        %365 = vmatpush1.msra.mxu0 0.0
        %366 = vmatprep.subr.mxu0 0.0
        %367 = vmatpush1.msra.mxu0 0.0
        %368 = vmatprep.subr.mxu0 0.0
        %369 = vmatpush1.msra.mxu0 0.0
        %370 = vmatprep.subr.mxu0 0.0
        %371 = vmatpush1.msra.mxu0 0.0
        %372 = vmatprep.subr.mxu0 0.0
        %373 = vmatpush1.msra.mxu0 0.0
        %374 = vmatprep.subr.mxu0 %v342
        %375 = vmatpush1.msra.mxu0 %v340
        %376 = vmatprep.subr.mxu0 0.0
        %377 = vmatpush2.msra.mxu0 0.0
        %378 = vmatprep.subr.mxu0 0.0
        %379 = vmatpush2.msra.mxu0 0.0
        %380 = vmatprep.subr.mxu0 0.0
        %381 = vmatpush2.msra.mxu0 0.0
        %382 = vmatprep.subr.mxu0 0.0
        %383 = vmatpush2.msra.mxu0 0.0
        %384 = vmatprep.subr.mxu0 0.0
        %385 = vmatpush2.msra.mxu0 0.0
        %386 = vmatprep.subr.mxu0 0.0
        %387 = vmatpush2.msra.mxu0 0.0
        %388 = vmatprep.subr.mxu0 0.0
        %389 = vmatpush2.msra.mxu0 0.0
        %390 = vmatprep.subr.mxu0 0.0
        %391 = vmatpush2.msra.mxu0 0.0
        %392 = vmatprep.subr.mxu0 0.0
        %393 = vmatpush2.msra.mxu0 0.0
        %394 = vmatprep.subr.mxu0 0.0
        %395 = vmatpush2.msra.mxu0 0.0
        %396 = vmatprep.subr.mxu0 0.0
        %397 = vmatpush2.msra.mxu0 0.0
        %398 = vmatprep.subr.mxu0 0.0
        %399 = vmatpush2.msra.mxu0 0.0
        %400 = vmatprep.subr.mxu0 0.0
        %401 = vmatpush2.msra.mxu0 0.0
        %402 = vmatprep.subr.mxu0 0.0
        %403 = vmatpush2.msra.mxu0 0.0
        %404 = vmatprep.subr.mxu0 0.0
        %405 = vmatpush2.msra.mxu0 0.0
        %406 = vmatprep.subr.mxu0 0.0
        %407 = vmatpush2.msra.mxu0 0.0
        %408 = vmatprep.mubr.f32.mxu0 0.0
        %409 = vmatmul.mubr.f32.gmra.mxu0 %v329
        %v410 = vpop.f32.mrf.mxu0
        %v411 = vadd.f32 %v308, %v410
        %v412 = vpop.f32.mrf.mxu0
        %v413 = vadd.f32 %v308, %v412
        %414 = vmatprep.mubr.f32.mxu0 0.0
        %415 = vmatmul.mubr.f32.gmra.mxu0 %v332
        %v416 = vpop.f32.mrf.mxu0
        %v417 = vadd.f32 %v313, %v416
        %v418 = vpop.f32.mrf.mxu0
        %v419 = vadd.f32 %v313, %v418
        %420 = vmatprep.mubr.f32.mxu0 0.0
        %421 = vmatmul.mubr.f32.gmra.mxu0 %v335
        %v422 = vpop.f32.mrf.mxu0
        %v423 = vadd.f32 %v318, %v422
        %v424 = vpop.f32.mrf.mxu0
        %v425 = vadd.f32 %v318, %v424
        %426 = vmatprep.mubr.f32.mxu0 0.0
        %427 = vmatmul.mubr.f32.gmra.mxu0 %v338
        %v428 = vpop.f32.mrf.mxu0
        %v429 = vadd.f32 %v323, %v428
        %v430 = vpop.f32.mrf.mxu0
        %v431 = vadd.f32 %v323, %v430
        %432 = vdwg.mxu0
        %vm433 = vcmp.ge.f32.partialorder %v411, 0.0
        %vm434 = vcmp.ge.f32.partialorder %v413, 0.0
        %vm435 = vcmp.ge.f32.partialorder %v417, 0.0
        %vm436 = vcmp.ge.f32.partialorder %v419, 0.0
        %vm437 = vcmp.ge.f32.partialorder %v423, 0.0
        %vm438 = vcmp.ge.f32.partialorder %v425, 0.0
        %vm439 = vcmp.ge.f32.partialorder %v429, 0.0
        %vm440 = vcmp.ge.f32.partialorder %v431, 0.0
        %v441 = vmul.f32 %v411, 0.2
        %v442 = vmul.f32 %v413, 0.2
        %v443 = vmul.f32 %v417, 0.2
        %v444 = vmul.f32 %v419, 0.2
        %v445 = vmul.f32 %v423, 0.2
        %v446 = vmul.f32 %v425, 0.2
        %v447 = vmul.f32 %v429, 0.2
        %v448 = vmul.f32 %v431, 0.2
        %v449 = vsel %vm433, %v411, %v441
        %v450 = vsel %vm434, %v413, %v442
        %v451 = vsel %vm435, %v417, %v443
        %v452 = vsel %vm436, %v419, %v444
        %v453 = vsel %vm437, %v423, %v445
        %v454 = vsel %vm438, %v425, %v446
        %v455 = vsel %vm439, %v429, %v447
        %v456 = vsel %vm440, %v431, %v448
        %v457 = vld [vmem:[%s4] sm:$0xff]
        %v458 = vld [vmem:[%s5] sm:$0xff]
        %460 = vset.pattern.permute.xlu0 0
        %461 = vperm.xlu0 %460, %v458
        %v462 = vpop.permute.xlu0 %461
        %vm464 = vcmask 261120
        %v466 = vsel %vm464, %v457, 0
        %468 = vmatprep.subr.mxu0 0.0
        %469 = vmatpush1.msra.mxu0 0.0
        %470 = vmatprep.subr.mxu0 0.0
        %471 = vmatpush1.msra.mxu0 0.0
        %472 = vmatprep.subr.mxu0 0.0
        %473 = vmatpush1.msra.mxu0 0.0
        %474 = vmatprep.subr.mxu0 0.0
        %475 = vmatpush1.msra.mxu0 0.0
        %476 = vmatprep.subr.mxu0 0.0
        %477 = vmatpush1.msra.mxu0 0.0
        %478 = vmatprep.subr.mxu0 0.0
        %479 = vmatpush1.msra.mxu0 0.0
        %480 = vmatprep.subr.mxu0 0.0
        %481 = vmatpush1.msra.mxu0 0.0
        %482 = vmatprep.subr.mxu0 0.0
        %483 = vmatpush1.msra.mxu0 0.0
        %484 = vmatprep.subr.mxu0 0.0
        %485 = vmatpush1.msra.mxu0 0.0
        %486 = vmatprep.subr.mxu0 0.0
        %487 = vmatpush1.msra.mxu0 0.0
        %488 = vmatprep.subr.mxu0 0.0
        %489 = vmatpush1.msra.mxu0 0.0
        %490 = vmatprep.subr.mxu0 0.0
        %491 = vmatpush1.msra.mxu0 0.0
        %492 = vmatprep.subr.mxu0 %v456
        %493 = vmatpush1.msra.mxu0 %v455
        %494 = vmatprep.subr.mxu0 %v454
        %495 = vmatpush1.msra.mxu0 %v453
        %496 = vmatprep.subr.mxu0 %v452
        %497 = vmatpush1.msra.mxu0 %v451
        %498 = vmatprep.subr.mxu0 %v450
        %499 = vmatpush1.msra.mxu0 %v449
        %500 = vmatprep.subr.mxu0 0.0
        %501 = vmatpush2.msra.mxu0 0.0
        %502 = vmatprep.subr.mxu0 0.0
        %503 = vmatpush2.msra.mxu0 0.0
        %504 = vmatprep.subr.mxu0 0.0
        %505 = vmatpush2.msra.mxu0 0.0
        %506 = vmatprep.subr.mxu0 0.0
        %507 = vmatpush2.msra.mxu0 0.0
        %508 = vmatprep.subr.mxu0 0.0
        %509 = vmatpush2.msra.mxu0 0.0
        %510 = vmatprep.subr.mxu0 0.0
        %511 = vmatpush2.msra.mxu0 0.0
        %512 = vmatprep.subr.mxu0 0.0
        %513 = vmatpush2.msra.mxu0 0.0
        %514 = vmatprep.subr.mxu0 0.0
        %515 = vmatpush2.msra.mxu0 0.0
        %516 = vmatprep.subr.mxu0 0.0
        %517 = vmatpush2.msra.mxu0 0.0
        %518 = vmatprep.subr.mxu0 0.0
        %519 = vmatpush2.msra.mxu0 0.0
        %520 = vmatprep.subr.mxu0 0.0
        %521 = vmatpush2.msra.mxu0 0.0
        %522 = vmatprep.subr.mxu0 0.0
        %523 = vmatpush2.msra.mxu0 0.0
        %524 = vmatprep.subr.mxu0 0.0
        %525 = vmatpush2.msra.mxu0 0.0
        %526 = vmatprep.subr.mxu0 0.0
        %527 = vmatpush2.msra.mxu0 0.0
        %528 = vmatprep.subr.mxu0 0.0
        %529 = vmatpush2.msra.mxu0 0.0
        %530 = vmatprep.subr.mxu0 0.0
        %531 = vmatpush2.msra.mxu0 0.0
        %532 = vmatprep.mubr.f32.mxu0 0.0
        %533 = vmatmul.mubr.f32.gmra.mxu0 %v466
        %v534 = vpop.f32.mrf.mxu0
        %v535 = vadd.f32 %v462, %v534
        %v536 = vpop.f32.mrf.mxu0
        %v537 = vadd.f32 %v462, %v536
        %538 = vdwg.mxu0
        %v541 = vunpack.c.l.s4 839922192
        %v542 = vunpack.c.0.s8 %v541
        %v543 = vlaneseq
        %v544 = vshrl.u32 %v543, 7
        %v545 = vsub.s32 %v542, %v544
        %v546 = vrot.slane %v281, %v545
        %v548 = vsub.f32 %v270, %v546
        %v551 = vunpack.c.l.s4 839922192
        %v552 = vunpack.c.0.s8 %v551
        %v553 = vlaneseq
        %v554 = vshrl.u32 %v553, 7
        %v555 = vsub.s32 %v552, %v554
        %v556 = vrot.slane %v296, %v555
        %v558 = vmul.f32 %v548, %v556
        %v561 = vcombine.low %v535, %v537
        %v563 = vmul.f32 %v558, %v561
        %v564 = vcombine.high %v535, %v537
        %v566 = vadd.f32 %v563, %v564
        %v567 = vmul.f32 %v270, 0.1
        %v568 = vadd.f32 %v566, %v567
        %569 = vst [vmem:[%s259] sm:$0xff] %v568
        %s570 = sand.u32 %s164, 1
        %s571 = scalar_lea.sflag [#allocation3], %s570
        %s572 = sand.u32 %s164, 1
        %s573 = smul.addr %s572, 8
        %s574 = scalar_lea.vmem [#allocation2], %s573
        // Predicated region
        $region45: #{tpu_custom_call.1} parent=43 // pred_check
          %p575 = pneg %p174
        $region46: #{tpu_custom_call.1} parent=43 // pred_check_branch
          %577 = sbr.rel (%p575) target = $region48
        $region47: #{tpu_custom_call.1} parent=43 // pred_region
          %s579 = ssub.s32 128, 128
          %580 = vsyncadd %s571, %s579
          %s581 = smul.addr %s20, 2
          %s582 = smul.addr %s581, 64
          %s583 = scalar_lea.hbm %s6, %s582
          %s585 = sshll.u32 %s574, 4
          %s586 = int_to_ptr.vmem [resolvable:$true] %s585
          %588 = dma.vmem_to_hbm [thread:$0]  %s586, 128, %s583, %s571
        $region48: #{tpu_custom_call.1} parent=43 // pred_fallthru
          _
      $region44: #{tpu_custom_call.1} parent=5 // pred_fallthru
        _
      %p589 = scmp.le.s32.totalorder 2, %s15
      // Predicated region
      $region49: #{tpu_custom_call.1} parent=5 // pred_check
        %p590 = pneg %p589
      $region50: #{tpu_custom_call.1} parent=5 // pred_check_branch
        %592 = sbr.rel (%p590) target = $region52
      $region51: #{tpu_custom_call.1} parent=5 // pred_region
        %s593 = ssub.s32 %s15, 2
        // Predicated region
        $region53: #{tpu_custom_call.1} parent=51 // pred_check
          %p594 = pneg %p180
        $region54: #{tpu_custom_call.1} parent=51 // pred_check_branch
          %596 = sbr.rel (%p594) target = $region56
        $region55: #{tpu_custom_call.1} parent=51 // pred_region
          %s597 = sand.u32 %s165, 1
          %s598 = scalar_lea.sflag [#allocation3], %s597
          %s599 = sand.u32 %s165, 1
          %s600 = smul.addr %s599, 8
          %s601 = scalar_lea.vmem [#allocation2], %s600
          %602 = dma.done %s598, 128
        $region56: #{tpu_custom_call.1} parent=51 // pred_fallthru
          _
      $region52: #{tpu_custom_call.1} parent=5 // pred_fallthru
        _
    $region6: #{tpu_custom_call.1} parent=1 // loop_footer
      %s19 = sadd.s32 1, %s15
    $region7: #{tpu_custom_call.1} parent=1 // loop_footer_branch
      %14 = sbr.rel target = $region3
    $region8: #{tpu_custom_call.1} parent=1 // loop_exit
      _
    %603 = vsyncpa [#allocation3], 1
    %s604 = scalar_lea.sflag [#allocation3], 1
    %605 = vsyncpa %s604, 1

</llo_original>
